<compile_context>
chip_gen: v5e
topology: v5e:2x2
jax: 0.10.0
libtpu: 0.0.40
codegen_flags: <defaults>
</compile_context>

<pallas_src>
import math

import jax
import jax.numpy as jnp
from jax import lax
from jax.experimental import pallas as pl
from jax.experimental.pallas import tpu as pltpu


def _bilstm_dir_kernel(gx_ref, whh_ref, out_ref):
    """One direction of one bidirectional LSTM layer; full time loop in-kernel.

    gx_ref : (1, T, B, 4H)  precomputed input projection + bias for this direction
    whh_ref: (1, H, 4H)     recurrent weight (transposed PyTorch weight_hh)
    out_ref: (1, T, B, H)   per-timestep hidden states for this direction
    Grid axis 0 = direction (0: forward, 1: backward) -> independent, "parallel".
    """
    d = pl.program_id(0)
    _, T, B, G = gx_ref.shape
    H = G // 4
    whh = whh_ref[0]                                   # (H, 4H), loaded once

    def step(s, carry):
        h, c = carry
        # forward walks t = 0..T-1, backward walks t = T-1..0 (no HBM reversal copies)
        t = jnp.where(d == 0, s, T - 1 - s)
        gates = gx_ref[0, t] + jnp.dot(h, whh, preferred_element_type=jnp.float32)  # (B, 4H)

        # Full-vreg transcendentals (EUP), then lane slices; PyTorch gate order i, f, g, o.
        sg = jax.nn.sigmoid(gates)
        tg = jnp.tanh(gates)
        i_g = sg[:, 0 * H:1 * H]
        f_g = sg[:, 1 * H:2 * H]
        g_g = tg[:, 2 * H:3 * H]
        o_g = sg[:, 3 * H:4 * H]

        c_new = f_g * c + i_g * g_g
        h_new = o_g * jnp.tanh(c_new)
        out_ref[0, t] = h_new.astype(out_ref.dtype)
        return (h_new, c_new)

    zeros = jnp.zeros((B, H), jnp.float32)
    lax.fori_loop(0, T, step, (zeros, zeros), unroll=True)


def bilstm_layer(x, w_ih_t, w_hh_t, bias):
    """One bidirectional LSTM layer.

    x:      (T, B, D_in) float32
    w_ih_t: (2, D_in, 4H)   stacked [fwd, bwd] transposed weight_ih
    w_hh_t: (2, H, 4H)      stacked [fwd, bwd] transposed weight_hh
    bias:   (2, 4H)         stacked [fwd, bwd] (b_ih + b_hh)
    returns (outputs (T, B, 2H), state (B, 2H))
    """
    T, B, _ = x.shape
    H = w_hh_t.shape[1]

    # Hoisted input projection: one big MXU-friendly matmul over the whole sequence,
    # bias folded in once (not re-broadcast every timestep).
    gates_x = jnp.einsum("tbe,deg->dtbg", x, w_ih_t,
                         preferred_element_type=jnp.float32) + bias[:, None, None, :]

    out = pl.pallas_call(
        _bilstm_dir_kernel,
        out_shape=jax.ShapeDtypeStruct((2, T, B, H), jnp.float32),
        grid_spec=pltpu.PrefetchScalarGridSpec(
            num_scalar_prefetch=0,
            grid=(2,),                                    # direction axis only
            in_specs=[
                pl.BlockSpec((1, T, B, 4 * H), lambda d: (d, 0, 0, 0)),
                pl.BlockSpec((1, H, 4 * H), lambda d: (d, 0, 0)),
            ],
            out_specs=pl.BlockSpec((1, T, B, H), lambda d: (d, 0, 0, 0)),
        ),
        compiler_params=pltpu.CompilerParams(
            dimension_semantics=("parallel",)),           # fwd/bwd independent (2 TCs on v7x)
    )(gates_x, w_hh_t)

    outputs = jnp.concatenate([out[0], out[1]], axis=-1)          # (T, B, 2H)
    # h_n fwd = hidden at t=T-1; h_n bwd = hidden at t=0 (bwd processed T-1..0)
    state = jnp.concatenate([out[0, T - 1], out[1, 0]], axis=-1)  # (B, 2H)
    return outputs, state


def init_encoder_params(key, vocab_size, embedding_dim, enc_units, num_layers):
    """Deterministic synthetic parameters, PyTorch-like uniform(-1/sqrt(H), 1/sqrt(H))."""
    params = {}
    k_emb, key = jax.random.split(key)
    params["embedding"] = jax.random.normal(
        k_emb, (vocab_size, embedding_dim), jnp.float32)

    bound = 1.0 / math.sqrt(enc_units)
    layers = []
    for layer in range(num_layers):
        d_in = embedding_dim if layer == 0 else 2 * enc_units
        w_ih_l, w_hh_l, bias_l = [], [], []
        for _ in range(2):  # forward, backward
            key, k1, k2, k3, k4 = jax.random.split(key, 5)
            w_ih = jax.random.uniform(k1, (4 * enc_units, d_in), jnp.float32, -bound, bound)
            w_hh = jax.random.uniform(k2, (4 * enc_units, enc_units), jnp.float32, -bound, bound)
            b_ih = jax.random.uniform(k3, (4 * enc_units,), jnp.float32, -bound, bound)
            b_hh = jax.random.uniform(k4, (4 * enc_units,), jnp.float32, -bound, bound)
            w_ih_l.append(w_ih.T)            # (d_in, 4H)
            w_hh_l.append(w_hh.T)            # (H, 4H)
            bias_l.append(b_ih + b_hh)       # (4H,)
        layers.append({
            "w_ih_t": jnp.stack(w_ih_l),     # (2, d_in, 4H)
            "w_hh_t": jnp.stack(w_hh_l),     # (2, H, 4H)
            "bias": jnp.stack(bias_l),       # (2, 4H)
        })
    params["layers"] = layers
    return params


def encoder_forward(params, tokens):
    """tokens: (T, B) int32 -> (outputs (T, B, 2H), state (B, 2H))."""
    x = params["embedding"][tokens]          # embedding gather stays in plain JAX
    # Dropout: identity in eval mode (PyTorch nn.Dropout at inference).
    # TODO(synk): training-mode dropout (RNG mask) not implemented.
    state = None
    for layer in params["layers"]:
        x, state = bilstm_layer(x, layer["w_ih_t"], layer["w_hh_t"], layer["bias"])
    return x, state


# ----------------------- pure-JAX reference (correctness check) -----------------------

def _lstm_ref_dir(x, w_ih_t, w_hh_t, bias, reverse):
    T, B, _ = x.shape
    H = w_hh_t.shape[0]
    xs = x[::-1] if reverse else x

    def step(carry, x_t):
        h, c = carry
        g = x_t @ w_ih_t + h @ w_hh_t + bias
        i = jax.nn.sigmoid(g[:, :H])
        f = jax.nn.sigmoid(g[:, H:2 * H])
        gg = jnp.tanh(g[:, 2 * H:3 * H])
        o = jax.nn.sigmoid(g[:, 3 * H:])
        c = f * c + i * gg
        h = o * jnp.tanh(c)
        return (h, c), h

    init = (jnp.zeros((B, H), jnp.float32), jnp.zeros((B, H), jnp.float32))
    (h_last, _), ys = lax.scan(step, init, xs)
    ys = ys[::-1] if reverse else ys
    return ys, h_last


def encoder_ref(params, tokens):
    x = params["embedding"][tokens]
    state = None
    for layer in params["layers"]:
        of, hf = _lstm_ref_dir(x, layer["w_ih_t"][0], layer["w_hh_t"][0], layer["bias"][0], False)
        ob, hb = _lstm_ref_dir(x, layer["w_ih_t"][1], layer["w_hh_t"][1], layer["bias"][1], True)
        x = jnp.concatenate([of, ob], axis=-1)
        state = jnp.concatenate([hf, hb], axis=-1)
    return x, state


if __name__ == "__main__":
    vocab_size = 50
    embedding_dim = 32
    enc_units = 32
    num_layers = 2
    seq_len = 8
    batch = 4

    key = jax.random.PRNGKey(0)
    k_tok, k_par = jax.random.split(key)
    tokens = jax.random.randint(k_tok, (seq_len, batch), 0, vocab_size, dtype=jnp.int32)
    params = init_encoder_params(k_par, vocab_size, embedding_dim, enc_units, num_layers)

    outputs, state = jax.jit(encoder_forward)(params, tokens)
    jax.block_until_ready((outputs, state))

    assert outputs.shape == (seq_len, batch, 2 * enc_units)
    assert state.shape == (batch, 2 * enc_units)

    ref_out, ref_state = encoder_ref(params, tokens)
    assert bool(jnp.allclose(outputs, ref_out, rtol=1e-4, atol=1e-4))
    assert bool(jnp.allclose(state, ref_state, rtol=1e-4, atol=1e-4))

    print("KERNEL_OK")
</pallas_src>

<mosaic_0001>
module attributes {stable_mosaic.version = 11 : i64} {
  func.func @_bilstm_dir_kernel(%arg0: i32, %arg1: memref<1x8x4x128xf32, #tpu.memory_space<vmem>>, %arg2: memref<1x32x128xf32, #tpu.memory_space<vmem>>, %arg3: memref<1x8x4x32xf32, #tpu.memory_space<vmem>>) attributes {dimension_semantics = [#tpu.dimension_semantics<parallel>], iteration_bounds = array<i64: 2>, scalar_prefetch = 0 : i64, scratch_operands = 0 : i64, tpu.core_type = #tpu.core_type<tc>, window_params = [{transform_indices = @transform_0, window_bounds = array<i64: 1, 8, 4, 128>}, {transform_indices = @transform_1, window_bounds = array<i64: 1, 32, 128>}, {transform_indices = @transform_2, window_bounds = array<i64: 1, 8, 4, 32>}]} {
    %c0 = arith.constant 0 : index
    %c0_0 = arith.constant 0 : index
    %c0_1 = arith.constant 0 : index
    %0 = vector.load %arg2[%c0, %c0_0, %c0_1] : memref<1x32x128xf32, #tpu.memory_space<vmem>>, vector<1x32x128xf32>
    %1 = vector.shape_cast %0 : vector<1x32x128xf32> to vector<32x128xf32>
    %cst = arith.constant 0.000000e+00 : f32
    %2 = vector.broadcast %cst : f32 to vector<4x32xf32>
    %c0_i32 = arith.constant 0 : i32
    %c0_i32_2 = arith.constant 0 : i32
    %3 = arith.cmpi eq, %arg0, %c0_i32_2 : i32
    %c7_i32 = arith.constant 7 : i32
    %4 = arith.subi %c7_i32, %c0_i32 : i32
    %5 = arith.select %3, %c0_i32, %4 : i32
    %c0_3 = arith.constant 0 : index
    %6 = arith.index_cast %5 : i32 to index
    %c0_4 = arith.constant 0 : index
    %c0_5 = arith.constant 0 : index
    %7 = vector.load %arg1[%c0_3, %6, %c0_4, %c0_5] : memref<1x8x4x128xf32, #tpu.memory_space<vmem>>, vector<1x1x4x128xf32>
    %8 = vector.shape_cast %7 : vector<1x1x4x128xf32> to vector<4x128xf32>
    %cst_6 = arith.constant dense<0.000000e+00> : vector<4x128xf32>
    %9 = tpu.matmul %2, %1, %cst_6 {dimension_numbers = #tpu.dot_dimension_numbers<[1], [0], [0], [1], [0, 0, 1, 1], [], []>} : vector<4x32xf32>, vector<32x128xf32>, vector<4x128xf32> -> vector<4x128xf32>
    %10 = arith.addf %8, %9 : vector<4x128xf32>
    %11 = arith.negf %10 : vector<4x128xf32>
    %12 = math.exp %11 : vector<4x128xf32>
    %cst_7 = arith.constant 1.000000e+00 : f32
    %13 = vector.broadcast %cst_7 : f32 to vector<4x128xf32>
    %14 = arith.addf %13, %12 : vector<4x128xf32>
    %15 = arith.divf %13, %14 : vector<4x128xf32>
    %16 = math.tanh %10 : vector<4x128xf32>
    %17 = vector.extract_strided_slice %15 {offsets = [0, 0], sizes = [4, 32], strides = [1, 1]} : vector<4x128xf32> to vector<4x32xf32>
    %18 = vector.extract_strided_slice %15 {offsets = [0, 32], sizes = [4, 32], strides = [1, 1]} : vector<4x128xf32> to vector<4x32xf32>
    %19 = vector.extract_strided_slice %16 {offsets = [0, 64], sizes = [4, 32], strides = [1, 1]} : vector<4x128xf32> to vector<4x32xf32>
    %20 = vector.extract_strided_slice %15 {offsets = [0, 96], sizes = [4, 32], strides = [1, 1]} : vector<4x128xf32> to vector<4x32xf32>
    %21 = arith.mulf %18, %2 : vector<4x32xf32>
    %22 = arith.mulf %17, %19 : vector<4x32xf32>
    %23 = arith.addf %21, %22 : vector<4x32xf32>
    %24 = math.tanh %23 : vector<4x32xf32>
    %25 = arith.mulf %20, %24 : vector<4x32xf32>
    %c0_8 = arith.constant 0 : index
    %26 = arith.index_cast %5 : i32 to index
    %c0_9 = arith.constant 0 : index
    %c0_10 = arith.constant 0 : index
    %27 = vector.load %arg3[%c0_8, %26, %c0_9, %c0_10] : memref<1x8x4x32xf32, #tpu.memory_space<vmem>>, vector<1x1x4x32xf32>
    %28 = vector.shape_cast %27 : vector<1x1x4x32xf32> to vector<4x32xf32>
    %29 = vector.shape_cast %25 : vector<4x32xf32> to vector<1x1x4x32xf32>
    tpu.vector_store %arg3[%c0_8, %26, %c0_9, %c0_10], %29 {strides = array<i32>} : memref<1x8x4x32xf32, #tpu.memory_space<vmem>>, vector<1x1x4x32xf32>,
    %c1_i32 = arith.constant 1 : i32
    %c0_i32_11 = arith.constant 0 : i32
    %30 = arith.cmpi eq, %arg0, %c0_i32_11 : i32
    %c7_i32_12 = arith.constant 7 : i32
    %31 = arith.subi %c7_i32_12, %c1_i32 : i32
    %32 = arith.select %30, %c1_i32, %31 : i32
    %c0_13 = arith.constant 0 : index
    %33 = arith.index_cast %32 : i32 to index
    %c0_14 = arith.constant 0 : index
    %c0_15 = arith.constant 0 : index
    %34 = vector.load %arg1[%c0_13, %33, %c0_14, %c0_15] : memref<1x8x4x128xf32, #tpu.memory_space<vmem>>, vector<1x1x4x128xf32>
    %35 = vector.shape_cast %34 : vector<1x1x4x128xf32> to vector<4x128xf32>
    %cst_16 = arith.constant dense<0.000000e+00> : vector<4x128xf32>
    %36 = tpu.matmul %25, %1, %cst_16 {dimension_numbers = #tpu.dot_dimension_numbers<[1], [0], [0], [1], [0, 0, 1, 1], [], []>} : vector<4x32xf32>, vector<32x128xf32>, vector<4x128xf32> -> vector<4x128xf32>
    %37 = arith.addf %35, %36 : vector<4x128xf32>
    %38 = arith.negf %37 : vector<4x128xf32>
    %39 = math.exp %38 : vector<4x128xf32>
    %cst_17 = arith.constant 1.000000e+00 : f32
    %40 = vector.broadcast %cst_17 : f32 to vector<4x128xf32>
    %41 = arith.addf %40, %39 : vector<4x128xf32>
    %42 = arith.divf %40, %41 : vector<4x128xf32>
    %43 = math.tanh %37 : vector<4x128xf32>
    %44 = vector.extract_strided_slice %42 {offsets = [0, 0], sizes = [4, 32], strides = [1, 1]} : vector<4x128xf32> to vector<4x32xf32>
    %45 = vector.extract_strided_slice %42 {offsets = [0, 32], sizes = [4, 32], strides = [1, 1]} : vector<4x128xf32> to vector<4x32xf32>
    %46 = vector.extract_strided_slice %43 {offsets = [0, 64], sizes = [4, 32], strides = [1, 1]} : vector<4x128xf32> to vector<4x32xf32>
    %47 = vector.extract_strided_slice %42 {offsets = [0, 96], sizes = [4, 32], strides = [1, 1]} : vector<4x128xf32> to vector<4x32xf32>
    %48 = arith.mulf %45, %23 : vector<4x32xf32>
    %49 = arith.mulf %44, %46 : vector<4x32xf32>
    %50 = arith.addf %48, %49 : vector<4x32xf32>
    %51 = math.tanh %50 : vector<4x32xf32>
    %52 = arith.mulf %47, %51 : vector<4x32xf32>
    %c0_18 = arith.constant 0 : index
    %53 = arith.index_cast %32 : i32 to index
    %c0_19 = arith.constant 0 : index
    %c0_20 = arith.constant 0 : index
    %54 = vector.load %arg3[%c0_18, %53, %c0_19, %c0_20] : memref<1x8x4x32xf32, #tpu.memory_space<vmem>>, vector<1x1x4x32xf32>
    %55 = vector.shape_cast %54 : vector<1x1x4x32xf32> to vector<4x32xf32>
    %56 = vector.shape_cast %52 : vector<4x32xf32> to vector<1x1x4x32xf32>
    tpu.vector_store %arg3[%c0_18, %53, %c0_19, %c0_20], %56 {strides = array<i32>} : memref<1x8x4x32xf32, #tpu.memory_space<vmem>>, vector<1x1x4x32xf32>,
    %c2_i32 = arith.constant 2 : i32
    %c0_i32_21 = arith.constant 0 : i32
    %57 = arith.cmpi eq, %arg0, %c0_i32_21 : i32
    %c7_i32_22 = arith.constant 7 : i32
    %58 = arith.subi %c7_i32_22, %c2_i32 : i32
    %59 = arith.select %57, %c2_i32, %58 : i32
    %c0_23 = arith.constant 0 : index
    %60 = arith.index_cast %59 : i32 to index
    %c0_24 = arith.constant 0 : index
    %c0_25 = arith.constant 0 : index
    %61 = vector.load %arg1[%c0_23, %60, %c0_24, %c0_25] : memref<1x8x4x128xf32, #tpu.memory_space<vmem>>, vector<1x1x4x128xf32>
    %62 = vector.shape_cast %61 : vector<1x1x4x128xf32> to vector<4x128xf32>
    %cst_26 = arith.constant dense<0.000000e+00> : vector<4x128xf32>
    %63 = tpu.matmul %52, %1, %cst_26 {dimension_numbers = #tpu.dot_dimension_numbers<[1], [0], [0], [1], [0, 0, 1, 1], [], []>} : vector<4x32xf32>, vector<32x128xf32>, vector<4x128xf32> -> vector<4x128xf32>
    %64 = arith.addf %62, %63 : vector<4x128xf32>
    %65 = arith.negf %64 : vector<4x128xf32>
    %66 = math.exp %65 : vector<4x128xf32>
    %cst_27 = arith.constant 1.000000e+00 : f32
    %67 = vector.broadcast %cst_27 : f32 to vector<4x128xf32>
    %68 = arith.addf %67, %66 : vector<4x128xf32>
    %69 = arith.divf %67, %68 : vector<4x128xf32>
    %70 = math.tanh %64 : vector<4x128xf32>
    %71 = vector.extract_strided_slice %69 {offsets = [0, 0], sizes = [4, 32], strides = [1, 1]} : vector<4x128xf32> to vector<4x32xf32>
    %72 = vector.extract_strided_slice %69 {offsets = [0, 32], sizes = [4, 32], strides = [1, 1]} : vector<4x128xf32> to vector<4x32xf32>
    %73 = vector.extract_strided_slice %70 {offsets = [0, 64], sizes = [4, 32], strides = [1, 1]} : vector<4x128xf32> to vector<4x32xf32>
    %74 = vector.extract_strided_slice %69 {offsets = [0, 96], sizes = [4, 32], strides = [1, 1]} : vector<4x128xf32> to vector<4x32xf32>
    %75 = arith.mulf %72, %50 : vector<4x32xf32>
    %76 = arith.mulf %71, %73 : vector<4x32xf32>
    %77 = arith.addf %75, %76 : vector<4x32xf32>
    %78 = math.tanh %77 : vector<4x32xf32>
    %79 = arith.mulf %74, %78 : vector<4x32xf32>
    %c0_28 = arith.constant 0 : index
    %80 = arith.index_cast %59 : i32 to index
    %c0_29 = arith.constant 0 : index
    %c0_30 = arith.constant 0 : index
    %81 = vector.load %arg3[%c0_28, %80, %c0_29, %c0_30] : memref<1x8x4x32xf32, #tpu.memory_space<vmem>>, vector<1x1x4x32xf32>
    %82 = vector.shape_cast %81 : vector<1x1x4x32xf32> to vector<4x32xf32>
    %83 = vector.shape_cast %79 : vector<4x32xf32> to vector<1x1x4x32xf32>
    tpu.vector_store %arg3[%c0_28, %80, %c0_29, %c0_30], %83 {strides = array<i32>} : memref<1x8x4x32xf32, #tpu.memory_space<vmem>>, vector<1x1x4x32xf32>,
    %c3_i32 = arith.constant 3 : i32
    %c0_i32_31 = arith.constant 0 : i32
    %84 = arith.cmpi eq, %arg0, %c0_i32_31 : i32
    %c7_i32_32 = arith.constant 7 : i32
    %85 = arith.subi %c7_i32_32, %c3_i32 : i32
    %86 = arith.select %84, %c3_i32, %85 : i32
    %c0_33 = arith.constant 0 : index
    %87 = arith.index_cast %86 : i32 to index
    %c0_34 = arith.constant 0 : index
    %c0_35 = arith.constant 0 : index
    %88 = vector.load %arg1[%c0_33, %87, %c0_34, %c0_35] : memref<1x8x4x128xf32, #tpu.memory_space<vmem>>, vector<1x1x4x128xf32>
    %89 = vector.shape_cast %88 : vector<1x1x4x128xf32> to vector<4x128xf32>
    %cst_36 = arith.constant dense<0.000000e+00> : vector<4x128xf32>
    %90 = tpu.matmul %79, %1, %cst_36 {dimension_numbers = #tpu.dot_dimension_numbers<[1], [0], [0], [1], [0, 0, 1, 1], [], []>} : vector<4x32xf32>, vector<32x128xf32>, vector<4x128xf32> -> vector<4x128xf32>
    %91 = arith.addf %89, %90 : vector<4x128xf32>
    %92 = arith.negf %91 : vector<4x128xf32>
    %93 = math.exp %92 : vector<4x128xf32>
    %cst_37 = arith.constant 1.000000e+00 : f32
    %94 = vector.broadcast %cst_37 : f32 to vector<4x128xf32>
    %95 = arith.addf %94, %93 : vector<4x128xf32>
    %96 = arith.divf %94, %95 : vector<4x128xf32>
    %97 = math.tanh %91 : vector<4x128xf32>
    %98 = vector.extract_strided_slice %96 {offsets = [0, 0], sizes = [4, 32], strides = [1, 1]} : vector<4x128xf32> to vector<4x32xf32>
    %99 = vector.extract_strided_slice %96 {offsets = [0, 32], sizes = [4, 32], strides = [1, 1]} : vector<4x128xf32> to vector<4x32xf32>
    %100 = vector.extract_strided_slice %97 {offsets = [0, 64], sizes = [4, 32], strides = [1, 1]} : vector<4x128xf32> to vector<4x32xf32>
    %101 = vector.extract_strided_slice %96 {offsets = [0, 96], sizes = [4, 32], strides = [1, 1]} : vector<4x128xf32> to vector<4x32xf32>
    %102 = arith.mulf %99, %77 : vector<4x32xf32>
    %103 = arith.mulf %98, %100 : vector<4x32xf32>
    %104 = arith.addf %102, %103 : vector<4x32xf32>
    %105 = math.tanh %104 : vector<4x32xf32>
    %106 = arith.mulf %101, %105 : vector<4x32xf32>
    %c0_38 = arith.constant 0 : index
    %107 = arith.index_cast %86 : i32 to index
    %c0_39 = arith.constant 0 : index
    %c0_40 = arith.constant 0 : index
    %108 = vector.load %arg3[%c0_38, %107, %c0_39, %c0_40] : memref<1x8x4x32xf32, #tpu.memory_space<vmem>>, vector<1x1x4x32xf32>
    %109 = vector.shape_cast %108 : vector<1x1x4x32xf32> to vector<4x32xf32>
    %110 = vector.shape_cast %106 : vector<4x32xf32> to vector<1x1x4x32xf32>
    tpu.vector_store %arg3[%c0_38, %107, %c0_39, %c0_40], %110 {strides = array<i32>} : memref<1x8x4x32xf32, #tpu.memory_space<vmem>>, vector<1x1x4x32xf32>,
    %c4_i32 = arith.constant 4 : i32
    %c0_i32_41 = arith.constant 0 : i32
    %111 = arith.cmpi eq, %arg0, %c0_i32_41 : i32
    %c7_i32_42 = arith.constant 7 : i32
    %112 = arith.subi %c7_i32_42, %c4_i32 : i32
    %113 = arith.select %111, %c4_i32, %112 : i32
    %c0_43 = arith.constant 0 : index
    %114 = arith.index_cast %113 : i32 to index
    %c0_44 = arith.constant 0 : index
    %c0_45 = arith.constant 0 : index
    %115 = vector.load %arg1[%c0_43, %114, %c0_44, %c0_45] : memref<1x8x4x128xf32, #tpu.memory_space<vmem>>, vector<1x1x4x128xf32>
    %116 = vector.shape_cast %115 : vector<1x1x4x128xf32> to vector<4x128xf32>
    %cst_46 = arith.constant dense<0.000000e+00> : vector<4x128xf32>
    %117 = tpu.matmul %106, %1, %cst_46 {dimension_numbers = #tpu.dot_dimension_numbers<[1], [0], [0], [1], [0, 0, 1, 1], [], []>} : vector<4x32xf32>, vector<32x128xf32>, vector<4x128xf32> -> vector<4x128xf32>
    %118 = arith.addf %116, %117 : vector<4x128xf32>
    %119 = arith.negf %118 : vector<4x128xf32>
    %120 = math.exp %119 : vector<4x128xf32>
    %cst_47 = arith.constant 1.000000e+00 : f32
    %121 = vector.broadcast %cst_47 : f32 to vector<4x128xf32>
    %122 = arith.addf %121, %120 : vector<4x128xf32>
    %123 = arith.divf %121, %122 : vector<4x128xf32>
    %124 = math.tanh %118 : vector<4x128xf32>
    %125 = vector.extract_strided_slice %123 {offsets = [0, 0], sizes = [4, 32], strides = [1, 1]} : vector<4x128xf32> to vector<4x32xf32>
    %126 = vector.extract_strided_slice %123 {offsets = [0, 32], sizes = [4, 32], strides = [1, 1]} : vector<4x128xf32> to vector<4x32xf32>
    %127 = vector.extract_strided_slice %124 {offsets = [0, 64], sizes = [4, 32], strides = [1, 1]} : vector<4x128xf32> to vector<4x32xf32>
    %128 = vector.extract_strided_slice %123 {offsets = [0, 96], sizes = [4, 32], strides = [1, 1]} : vector<4x128xf32> to vector<4x32xf32>
    %129 = arith.mulf %126, %104 : vector<4x32xf32>
    %130 = arith.mulf %125, %127 : vector<4x32xf32>
    %131 = arith.addf %129, %130 : vector<4x32xf32>
    %132 = math.tanh %131 : vector<4x32xf32>
    %133 = arith.mulf %128, %132 : vector<4x32xf32>
    %c0_48 = arith.constant 0 : index
    %134 = arith.index_cast %113 : i32 to index
    %c0_49 = arith.constant 0 : index
    %c0_50 = arith.constant 0 : index
    %135 = vector.load %arg3[%c0_48, %134, %c0_49, %c0_50] : memref<1x8x4x32xf32, #tpu.memory_space<vmem>>, vector<1x1x4x32xf32>
    %136 = vector.shape_cast %135 : vector<1x1x4x32xf32> to vector<4x32xf32>
    %137 = vector.shape_cast %133 : vector<4x32xf32> to vector<1x1x4x32xf32>
    tpu.vector_store %arg3[%c0_48, %134, %c0_49, %c0_50], %137 {strides = array<i32>} : memref<1x8x4x32xf32, #tpu.memory_space<vmem>>, vector<1x1x4x32xf32>,
    %c5_i32 = arith.constant 5 : i32
    %c0_i32_51 = arith.constant 0 : i32
    %138 = arith.cmpi eq, %arg0, %c0_i32_51 : i32
    %c7_i32_52 = arith.constant 7 : i32
    %139 = arith.subi %c7_i32_52, %c5_i32 : i32
    %140 = arith.select %138, %c5_i32, %139 : i32
    %c0_53 = arith.constant 0 : index
    %141 = arith.index_cast %140 : i32 to index
    %c0_54 = arith.constant 0 : index
    %c0_55 = arith.constant 0 : index
    %142 = vector.load %arg1[%c0_53, %141, %c0_54, %c0_55] : memref<1x8x4x128xf32, #tpu.memory_space<vmem>>, vector<1x1x4x128xf32>
    %143 = vector.shape_cast %142 : vector<1x1x4x128xf32> to vector<4x128xf32>
    %cst_56 = arith.constant dense<0.000000e+00> : vector<4x128xf32>
    %144 = tpu.matmul %133, %1, %cst_56 {dimension_numbers = #tpu.dot_dimension_numbers<[1], [0], [0], [1], [0, 0, 1, 1], [], []>} : vector<4x32xf32>, vector<32x128xf32>, vector<4x128xf32> -> vector<4x128xf32>
    %145 = arith.addf %143, %144 : vector<4x128xf32>
    %146 = arith.negf %145 : vector<4x128xf32>
    %147 = math.exp %146 : vector<4x128xf32>
    %cst_57 = arith.constant 1.000000e+00 : f32
    %148 = vector.broadcast %cst_57 : f32 to vector<4x128xf32>
    %149 = arith.addf %148, %147 : vector<4x128xf32>
    %150 = arith.divf %148, %149 : vector<4x128xf32>
    %151 = math.tanh %145 : vector<4x128xf32>
    %152 = vector.extract_strided_slice %150 {offsets = [0, 0], sizes = [4, 32], strides = [1, 1]} : vector<4x128xf32> to vector<4x32xf32>
    %153 = vector.extract_strided_slice %150 {offsets = [0, 32], sizes = [4, 32], strides = [1, 1]} : vector<4x128xf32> to vector<4x32xf32>
    %154 = vector.extract_strided_slice %151 {offsets = [0, 64], sizes = [4, 32], strides = [1, 1]} : vector<4x128xf32> to vector<4x32xf32>
    %155 = vector.extract_strided_slice %150 {offsets = [0, 96], sizes = [4, 32], strides = [1, 1]} : vector<4x128xf32> to vector<4x32xf32>
    %156 = arith.mulf %153, %131 : vector<4x32xf32>
    %157 = arith.mulf %152, %154 : vector<4x32xf32>
    %158 = arith.addf %156, %157 : vector<4x32xf32>
    %159 = math.tanh %158 : vector<4x32xf32>
    %160 = arith.mulf %155, %159 : vector<4x32xf32>
    %c0_58 = arith.constant 0 : index
    %161 = arith.index_cast %140 : i32 to index
    %c0_59 = arith.constant 0 : index
    %c0_60 = arith.constant 0 : index
    %162 = vector.load %arg3[%c0_58, %161, %c0_59, %c0_60] : memref<1x8x4x32xf32, #tpu.memory_space<vmem>>, vector<1x1x4x32xf32>
    %163 = vector.shape_cast %162 : vector<1x1x4x32xf32> to vector<4x32xf32>
    %164 = vector.shape_cast %160 : vector<4x32xf32> to vector<1x1x4x32xf32>
    tpu.vector_store %arg3[%c0_58, %161, %c0_59, %c0_60], %164 {strides = array<i32>} : memref<1x8x4x32xf32, #tpu.memory_space<vmem>>, vector<1x1x4x32xf32>,
    %c6_i32 = arith.constant 6 : i32
    %c0_i32_61 = arith.constant 0 : i32
    %165 = arith.cmpi eq, %arg0, %c0_i32_61 : i32
    %c7_i32_62 = arith.constant 7 : i32
    %166 = arith.subi %c7_i32_62, %c6_i32 : i32
    %167 = arith.select %165, %c6_i32, %166 : i32
    %c0_63 = arith.constant 0 : index
    %168 = arith.index_cast %167 : i32 to index
    %c0_64 = arith.constant 0 : index
    %c0_65 = arith.constant 0 : index
    %169 = vector.load %arg1[%c0_63, %168, %c0_64, %c0_65] : memref<1x8x4x128xf32, #tpu.memory_space<vmem>>, vector<1x1x4x128xf32>
    %170 = vector.shape_cast %169 : vector<1x1x4x128xf32> to vector<4x128xf32>
    %cst_66 = arith.constant dense<0.000000e+00> : vector<4x128xf32>
    %171 = tpu.matmul %160, %1, %cst_66 {dimension_numbers = #tpu.dot_dimension_numbers<[1], [0], [0], [1], [0, 0, 1, 1], [], []>} : vector<4x32xf32>, vector<32x128xf32>, vector<4x128xf32> -> vector<4x128xf32>
    %172 = arith.addf %170, %171 : vector<4x128xf32>
    %173 = arith.negf %172 : vector<4x128xf32>
    %174 = math.exp %173 : vector<4x128xf32>
    %cst_67 = arith.constant 1.000000e+00 : f32
    %175 = vector.broadcast %cst_67 : f32 to vector<4x128xf32>
    %176 = arith.addf %175, %174 : vector<4x128xf32>
    %177 = arith.divf %175, %176 : vector<4x128xf32>
    %178 = math.tanh %172 : vector<4x128xf32>
    %179 = vector.extract_strided_slice %177 {offsets = [0, 0], sizes = [4, 32], strides = [1, 1]} : vector<4x128xf32> to vector<4x32xf32>
    %180 = vector.extract_strided_slice %177 {offsets = [0, 32], sizes = [4, 32], strides = [1, 1]} : vector<4x128xf32> to vector<4x32xf32>
    %181 = vector.extract_strided_slice %178 {offsets = [0, 64], sizes = [4, 32], strides = [1, 1]} : vector<4x128xf32> to vector<4x32xf32>
    %182 = vector.extract_strided_slice %177 {offsets = [0, 96], sizes = [4, 32], strides = [1, 1]} : vector<4x128xf32> to vector<4x32xf32>
    %183 = arith.mulf %180, %158 : vector<4x32xf32>
    %184 = arith.mulf %179, %181 : vector<4x32xf32>
    %185 = arith.addf %183, %184 : vector<4x32xf32>
    %186 = math.tanh %185 : vector<4x32xf32>
    %187 = arith.mulf %182, %186 : vector<4x32xf32>
    %c0_68 = arith.constant 0 : index
    %188 = arith.index_cast %167 : i32 to index
    %c0_69 = arith.constant 0 : index
    %c0_70 = arith.constant 0 : index
    %189 = vector.load %arg3[%c0_68, %188, %c0_69, %c0_70] : memref<1x8x4x32xf32, #tpu.memory_space<vmem>>, vector<1x1x4x32xf32>
    %190 = vector.shape_cast %189 : vector<1x1x4x32xf32> to vector<4x32xf32>
    %191 = vector.shape_cast %187 : vector<4x32xf32> to vector<1x1x4x32xf32>
    tpu.vector_store %arg3[%c0_68, %188, %c0_69, %c0_70], %191 {strides = array<i32>} : memref<1x8x4x32xf32, #tpu.memory_space<vmem>>, vector<1x1x4x32xf32>,
    %c7_i32_71 = arith.constant 7 : i32
    %c0_i32_72 = arith.constant 0 : i32
    %192 = arith.cmpi eq, %arg0, %c0_i32_72 : i32
    %c7_i32_73 = arith.constant 7 : i32
    %193 = arith.subi %c7_i32_73, %c7_i32_71 : i32
    %194 = arith.select %192, %c7_i32_71, %193 : i32
    %c0_74 = arith.constant 0 : index
    %195 = arith.index_cast %194 : i32 to index
    %c0_75 = arith.constant 0 : index
    %c0_76 = arith.constant 0 : index
    %196 = vector.load %arg1[%c0_74, %195, %c0_75, %c0_76] : memref<1x8x4x128xf32, #tpu.memory_space<vmem>>, vector<1x1x4x128xf32>
    %197 = vector.shape_cast %196 : vector<1x1x4x128xf32> to vector<4x128xf32>
    %cst_77 = arith.constant dense<0.000000e+00> : vector<4x128xf32>
    %198 = tpu.matmul %187, %1, %cst_77 {dimension_numbers = #tpu.dot_dimension_numbers<[1], [0], [0], [1], [0, 0, 1, 1], [], []>} : vector<4x32xf32>, vector<32x128xf32>, vector<4x128xf32> -> vector<4x128xf32>
    %199 = arith.addf %197, %198 : vector<4x128xf32>
    %200 = arith.negf %199 : vector<4x128xf32>
    %201 = math.exp %200 : vector<4x128xf32>
    %cst_78 = arith.constant 1.000000e+00 : f32
    %202 = vector.broadcast %cst_78 : f32 to vector<4x128xf32>
    %203 = arith.addf %202, %201 : vector<4x128xf32>
    %204 = arith.divf %202, %203 : vector<4x128xf32>
    %205 = math.tanh %199 : vector<4x128xf32>
    %206 = vector.extract_strided_slice %204 {offsets = [0, 0], sizes = [4, 32], strides = [1, 1]} : vector<4x128xf32> to vector<4x32xf32>
    %207 = vector.extract_strided_slice %204 {offsets = [0, 32], sizes = [4, 32], strides = [1, 1]} : vector<4x128xf32> to vector<4x32xf32>
    %208 = vector.extract_strided_slice %205 {offsets = [0, 64], sizes = [4, 32], strides = [1, 1]} : vector<4x128xf32> to vector<4x32xf32>
    %209 = vector.extract_strided_slice %204 {offsets = [0, 96], sizes = [4, 32], strides = [1, 1]} : vector<4x128xf32> to vector<4x32xf32>
    %210 = arith.mulf %207, %185 : vector<4x32xf32>
    %211 = arith.mulf %206, %208 : vector<4x32xf32>
    %212 = arith.addf %210, %211 : vector<4x32xf32>
    %213 = math.tanh %212 : vector<4x32xf32>
    %214 = arith.mulf %209, %213 : vector<4x32xf32>
    %c0_79 = arith.constant 0 : index
    %215 = arith.index_cast %194 : i32 to index
    %c0_80 = arith.constant 0 : index
    %c0_81 = arith.constant 0 : index
    %216 = vector.load %arg3[%c0_79, %215, %c0_80, %c0_81] : memref<1x8x4x32xf32, #tpu.memory_space<vmem>>, vector<1x1x4x32xf32>
    %217 = vector.shape_cast %216 : vector<1x1x4x32xf32> to vector<4x32xf32>
    %218 = vector.shape_cast %214 : vector<4x32xf32> to vector<1x1x4x32xf32>
    tpu.vector_store %arg3[%c0_79, %215, %c0_80, %c0_81], %218 {strides = array<i32>} : memref<1x8x4x32xf32, #tpu.memory_space<vmem>>, vector<1x1x4x32xf32>,
    %c8_i32 = arith.constant 8 : i32
    return
  }
  func.func @transform_0(%arg0: i32) -> (i32, i32, i32, i32) {
    %c0_i32 = arith.constant 0 : i32
    %c0_i32_0 = arith.constant 0 : i32
    %c0_i32_1 = arith.constant 0 : i32
    %c0_i32_2 = arith.constant 0 : i32
    return %arg0, %c0_i32, %c0_i32_0, %c0_i32_1 : i32, i32, i32, i32
  }
  func.func @transform_1(%arg0: i32) -> (i32, i32, i32) {
    %c0_i32 = arith.constant 0 : i32
    %c0_i32_0 = arith.constant 0 : i32
    %c0_i32_1 = arith.constant 0 : i32
    return %arg0, %c0_i32, %c0_i32_0 : i32, i32, i32
  }
  func.func @transform_2(%arg0: i32) -> (i32, i32, i32, i32) {
    %c0_i32 = arith.constant 0 : i32
    %c0_i32_0 = arith.constant 0 : i32
    %c0_i32_1 = arith.constant 0 : i32
    %c0_i32_2 = arith.constant 0 : i32
    return %arg0, %c0_i32, %c0_i32_0, %c0_i32_1 : i32, i32, i32, i32
  }
}

</mosaic_0001>

<llo_original>
// kernel: encoder_forward.2
$region0: #{encoder_forward.2}
  #allocation0 [shape = 'u32[]', space=smem, size = 0x4, offset = 0x4, fixed_abs, tag = 'smem constant byte address 0x4 - core index']
  #allocation1 [shape = 'u32[72,128]{1,0:T(1,128)}', space=vmem, size = 0x9000, scoped, tag = 'internal scratch']
  %s0 = inlined_call_operand.vmem [shape: f32[2,8,4,128], index: 0, kind: input, shape index: {}]
  %s1 = inlined_call_operand.vmem [shape: f32[2,32,128], index: 1, kind: input, shape index: {}]
  %s2 = inlined_call_operand.vmem [shape: f32[2,8,4,32], index: 2, kind: output, shape index: {}]
  %s3 = sld [smem:[#allocation0]]
  $region41: #{encoder_forward.2} parent=0
    _
  %s5 = ssub.s32 1, %s3
  %s6 = scalar_select 0, %s5, %s3
  loop: start=0, step=1, limit=4
  $region2: #{encoder_forward.2} parent=0 // loop_pre_header
    _
  $region3: #{encoder_forward.2} parent=0 // loop_header
    %s8 = sphi 0, %s12
    %p9 = scmp.ge.s32.totalorder %s8, 4
    %s18 = sphi 0, %s20
    %s21 = sphi 0, %s18
    %s22 = sphi 0, %s21
    %s38 = sphi 0, %s22
    %s44 = sphi 0, %s46
    %s47 = sphi 0, %s44
    %s48 = sphi 0, %s47
    %s64 = sphi 0, %s48
    %s70 = sphi 0, %s72
    %s73 = sphi 0, %s70
    %s74 = sphi 0, %s73
    %s90 = sphi 0, %s74
  $region4: #{encoder_forward.2} parent=0 // loop_header_branch
    %11 = sbr.rel (%p9) target = $region8
  $region5: #{encoder_forward.2} parent=0 // loop_body
    %s13 = ssub.s32 %s8, 1
    %s14 = ssub.s32 %s8, 2
    %s15 = sadd.s32 %s8, 1
    %s16 = ssub.s32 %s8, %s15
    %p17 = scmp.eq.s32.totalorder %s16, 0
    %s19 = sadd.s32 %s18, 1
    %s20 = scalar_select %p17, %s18, %s19
    %p23 = pneg %p17
    %p24 = scmp.eq.s32.totalorder %s8, 1
    %p25 = por %p23, %p24
    %p26 = scmp.ne.s32.totalorder %s18, %s21
    %p27 = scmp.eq.s32.totalorder %s8, 0
    %p28 = por %p26, %p27
    %p29 = scmp.ne.s32.totalorder %s18, %s21
    %p30 = scmp.eq.s32.totalorder %s13, 1
    %p31 = por %p29, %p30
    %p32 = scmp.ne.s32.totalorder %s21, %s22
    %p33 = scmp.eq.s32.totalorder %s13, 0
    %p34 = por %p32, %p33
    %p35 = scmp.ne.s32.totalorder %s21, %s22
    %p36 = scmp.eq.s32.totalorder %s14, 1
    %p37 = por %p35, %p36
    %p39 = scmp.ne.s32.totalorder %s22, %s38
    %p40 = scmp.eq.s32.totalorder %s14, 0
    %p41 = por %p39, %p40
    %s42 = ssub.s32 %s8, %s15
    %p43 = scmp.eq.s32.totalorder %s42, 0
    %s45 = sadd.s32 %s44, 1
    %s46 = scalar_select %p43, %s44, %s45
    %p49 = pneg %p43
    %p50 = scmp.eq.s32.totalorder %s8, 1
    %p51 = por %p49, %p50
    %p52 = scmp.ne.s32.totalorder %s44, %s47
    %p53 = scmp.eq.s32.totalorder %s8, 0
    %p54 = por %p52, %p53
    %p55 = scmp.ne.s32.totalorder %s44, %s47
    %p56 = scmp.eq.s32.totalorder %s13, 1
    %p57 = por %p55, %p56
    %p58 = scmp.ne.s32.totalorder %s47, %s48
    %p59 = scmp.eq.s32.totalorder %s13, 0
    %p60 = por %p58, %p59
    %p61 = scmp.ne.s32.totalorder %s47, %s48
    %p62 = scmp.eq.s32.totalorder %s14, 1
    %p63 = por %p61, %p62
    %p65 = scmp.ne.s32.totalorder %s48, %s64
    %p66 = scmp.eq.s32.totalorder %s14, 0
    %p67 = por %p65, %p66
    %s68 = ssub.s32 %s8, %s15
    %p69 = scmp.eq.s32.totalorder %s68, 0
    %s71 = sadd.s32 %s70, 1
    %s72 = scalar_select %p69, %s70, %s71
    %p75 = pneg %p69
    %p76 = scmp.eq.s32.totalorder %s8, 1
    %p77 = por %p75, %p76
    %p78 = scmp.ne.s32.totalorder %s70, %s73
    %p79 = scmp.eq.s32.totalorder %s8, 0
    %p80 = por %p78, %p79
    %p81 = scmp.ne.s32.totalorder %s70, %s73
    %p82 = scmp.eq.s32.totalorder %s13, 1
    %p83 = por %p81, %p82
    %p84 = scmp.ne.s32.totalorder %s73, %s74
    %p85 = scmp.eq.s32.totalorder %s13, 0
    %p86 = por %p84, %p85
    %p87 = scmp.ne.s32.totalorder %s73, %s74
    %p88 = scmp.eq.s32.totalorder %s14, 1
    %p89 = por %p87, %p88
    %p91 = scmp.ne.s32.totalorder %s74, %s90
    %p92 = scmp.eq.s32.totalorder %s14, 0
    %p93 = por %p91, %p92
    %p94 = scmp.le.s32.totalorder 1, %s8
    %p95 = scmp.lt.s32.totalorder %s8, 3
    %p96 = pnand %p94, %p95
    %p97 = pneg %p96
    // Predicated region
    $region9: #{encoder_forward.2} parent=5 // pred_check
      _
    $region10: #{encoder_forward.2} parent=5 // pred_check_branch
      %99 = sbr.rel (%p96) target = $region12
    $region11: #{encoder_forward.2} parent=5 // pred_region
      %s100 = ssub.s32 %s8, 1
    $region12: #{encoder_forward.2} parent=5 // pred_fallthru
      _
    %p101 = scmp.lt.s32.totalorder %s8, 2
    // Predicated region
    $region13: #{encoder_forward.2} parent=5 // pred_check
      %p102 = pneg %p101
    $region14: #{encoder_forward.2} parent=5 // pred_check_branch
      %104 = sbr.rel (%p102) target = $region16
    $region15: #{encoder_forward.2} parent=5 // pred_region
      // Predicated region
      $region17: #{encoder_forward.2} parent=15 // pred_check
        %p105 = pneg %p28
      $region18: #{encoder_forward.2} parent=15 // pred_check_branch
        %107 = sbr.rel (%p105) target = $region20
      $region19: #{encoder_forward.2} parent=15 // pred_region
        %p108 = scmp.lt.s32.totalorder %s8, 1
        %s109 = scalar_select %p108, %s8, 1
        %s110 = smul.addr %s109, 8
        %s111 = smul.addr %s110, 4
        %s112 = scalar_lea.vmem %s0, %s111
      $region20: #{encoder_forward.2} parent=15 // pred_fallthru
        _
      // Predicated region
      $region21: #{encoder_forward.2} parent=15 // pred_check
        %p113 = pneg %p54
      $region22: #{encoder_forward.2} parent=15 // pred_check_branch
        %115 = sbr.rel (%p113) target = $region24
      $region23: #{encoder_forward.2} parent=15 // pred_region
        %p116 = scmp.lt.s32.totalorder %s8, 1
        %s117 = scalar_select %p116, %s8, 1
        %s118 = smul.addr %s117, 4
        %s119 = smul.addr %s118, 8
        %s120 = scalar_lea.vmem %s1, %s119
      $region24: #{encoder_forward.2} parent=15 // pred_fallthru
        _
    $region16: #{encoder_forward.2} parent=5 // pred_fallthru
      _
    %p121 = scmp.le.s32.totalorder 1, %s8
    %p122 = scmp.lt.s32.totalorder %s8, 3
    %p123 = pnand %p121, %p122
    %p124 = pneg %p123
    // Predicated region
    $region25: #{encoder_forward.2} parent=5 // pred_check
      _
    $region26: #{encoder_forward.2} parent=5 // pred_check_branch
      %126 = sbr.rel (%p123) target = $region28
    $region27: #{encoder_forward.2} parent=5 // pred_region
      %s127 = ssub.s32 %s8, 1
      %p128 = scmp.lt.s32.totalorder %s13, 1
      %s129 = scalar_select %p128, %s13, 1
      %s130 = smul.addr %s129, 8
      %s131 = smul.addr %s130, 4
      %s132 = scalar_lea.vmem %s0, %s131
      %p133 = pneg %p34
      %p134 = pneg %p31
      %p135 = scmp.lt.s32.totalorder %s13, 1
      %s136 = scalar_select %p135, %s13, 1
      %s137 = smul.addr %s136, 4
      %s138 = smul.addr %s137, 8
      %s139 = scalar_lea.vmem %s1, %s138
      %p140 = pneg %p60
      %p141 = pneg %p57
      %p142 = pneg %p86
      %p143 = pneg %p83
      %p144 = scmp.lt.s32.totalorder %s13, 1
      %s145 = scalar_select %p144, %s13, 1
      %s146 = smul.addr %s145, 8
      %s147 = smul.addr %s146, 4
      %s148 = scalar_lea.vmem %s2, %s147
      %p149 = scmp.lt.s32.totalorder %s13, 1
      %s150 = scalar_select %p149, %s13, 1
      %s151 = smul.addr %s150, 8
      %s152 = smul.addr %s151, 4
      %s153 = scalar_lea.vmem %s0, %s152
      %p154 = scmp.lt.s32.totalorder %s13, 1
      %s155 = scalar_select %p154, %s13, 1
      %s156 = smul.addr %s155, 4
      %s157 = smul.addr %s156, 8
      %s158 = scalar_lea.vmem %s1, %s157
      %p159 = scmp.lt.s32.totalorder %s13, 1
      %s160 = scalar_select %p159, %s13, 1
      %s161 = smul.addr %s160, 8
      %s162 = smul.addr %s161, 4
      %s163 = scalar_lea.vmem %s2, %s162
      %v164 = vld [vmem:[%s158] sm:$0xff]
      %v165 = vld [vmem:[%s158 + $0x8] sm:$0xff]
      %v166 = vld [vmem:[%s158 + $0x10] sm:$0xff]
      %v167 = vld [vmem:[%s158 + $0x18] sm:$0xff]
      %p168 = scmp.eq.s32.totalorder %s13, 0
      %s169 = scalar_select %p168, 0, 7
      %s170 = smul.u32 %s169, 4
      %s171 = scalar_lea.vmem %s153, %s170
      %v172 = vld [vmem:[%s171] sm:$0xf]
      %vm173 = vcmask 261120
      %v175 = vsel %vm173, 0.0, 0
      %177 = vmatpush.msra.mxu0 0.0
      %178 = vmatpush.msra.mxu0 0.0
      %179 = vmatpush.msra.mxu0 0.0
      %180 = vmatpush.msra.mxu0 0.0
      %181 = vmatpush.msra.mxu0 0.0
      %182 = vmatpush.msra.mxu0 0.0
      %183 = vmatpush.msra.mxu0 0.0
      %184 = vmatpush.msra.mxu0 0.0
      %185 = vmatpush.msra.mxu0 0.0
      %186 = vmatpush.msra.mxu0 0.0
      %187 = vmatpush.msra.mxu0 0.0
      %188 = vmatpush.msra.mxu0 0.0
      %189 = vmatpush.msra.mxu0 %v167
      %190 = vmatpush.msra.mxu0 %v166
      %191 = vmatpush.msra.mxu0 %v165
      %192 = vmatpush.msra.mxu0 %v164
      %193 = vmatmul.f32.gmra.mxu0 %v175
      %v194 = vpop.f32.mrf.mxu0
      %v195 = vadd.f32 0.0, %v194
      %196 = vdwg.mxu0
      %v197 = vadd.f32 %v172, %v195
      %v198 = vxor.u32 %v197, 2147483648
      %v199 = vmul.f32 %v198, 1.442695
      %v200 = vpow.pop %v199
      %v201 = vadd.f32 %v200, 1.0
      %v202 = vrcp.pop %v201
      %v203 = vmul.f32 %v201, %v202
      %v204 = vsub.f32 1.0, %v203
      %v205 = vmul.f32 %v202, %v204
      %v206 = vadd.f32 %v202, %v205
      %vm207 = vweird.f32 %v201
      %vm208 = vweird.f32 %v202
      %vm209 = vmor %vm207, %vm208
      %v210 = vsel %vm209, %v202, %v206
      %v211 = vand.u32 2147483647, %v201
      %vm212 = vcmp.eq.f32.partialorder %v211, 8.507059e+37
      %v213 = vand.u32 %v201, 2147483648
      %v214 = vor.u32 1.1754944e-38, %v213
      %v215 = vsel %vm212, %v214, %v210
      %v216 = vmul.f32 1.0, %v215
      %v217 = vtanh.pop %v197
      %v218 = vmul.f32 %v216, 0.0
      %220 = vrot.lane.b32.xlu0 %v217, 64
      %v221 = vpop.permute.xlu0 %220
      %v223 = vmul.f32 %v216, %v221
      %225 = vrot.lane.b32.xlu0 %v223, 32
      %v226 = vpop.permute.xlu0 %225
      %v228 = vadd.f32 %v218, %v226
      %v229 = vtanh.pop %v228
      %231 = vrot.lane.b32.xlu0 %v229, 64
      %v232 = vpop.permute.xlu0 %231
      %v234 = vmul.f32 %v216, %v232
      %236 = vrot.lane.b32.xlu0 %v234, 32
      %v237 = vpop.permute.xlu0 %236
      %s239 = scalar_lea.vmem %s163, %s170
      %vm240 = vcmask 257024
      %241 = vst.msk [vmem:[%s239] sm:$0xf] %vm240, %v237
      %s242 = scalar_select %p168, 1, 6
      %s243 = smul.u32 %s242, 4
      %s244 = scalar_lea.vmem %s153, %s243
      %v245 = vld [vmem:[%s244] sm:$0xf]
      %v246 = vsel %vm173, %v237, 0
      %248 = vmatpush.msra.mxu0 0.0
      %249 = vmatpush.msra.mxu0 0.0
      %250 = vmatpush.msra.mxu0 0.0
      %251 = vmatpush.msra.mxu0 0.0
      %252 = vmatpush.msra.mxu0 0.0
      %253 = vmatpush.msra.mxu0 0.0
      %254 = vmatpush.msra.mxu0 0.0
      %255 = vmatpush.msra.mxu0 0.0
      %256 = vmatpush.msra.mxu0 0.0
      %257 = vmatpush.msra.mxu0 0.0
      %258 = vmatpush.msra.mxu0 0.0
      %259 = vmatpush.msra.mxu0 0.0
      %260 = vmatpush.msra.mxu0 %v167
      %261 = vmatpush.msra.mxu0 %v166
      %262 = vmatpush.msra.mxu0 %v165
      %263 = vmatpush.msra.mxu0 %v164
      %264 = vmatmul.f32.gmra.mxu0 %v246
      %v265 = vpop.f32.mrf.mxu0
      %v266 = vadd.f32 0.0, %v265
      %267 = vdwg.mxu0
      %v268 = vadd.f32 %v245, %v266
      %v269 = vxor.u32 %v268, 2147483648
      %v270 = vmul.f32 %v269, 1.442695
      %v271 = vpow.pop %v270
      %v272 = vadd.f32 %v271, 1.0
      %v273 = vrcp.pop %v272
      %v274 = vmul.f32 %v272, %v273
      %v275 = vsub.f32 1.0, %v274
      %v276 = vmul.f32 %v273, %v275
      %v277 = vadd.f32 %v273, %v276
      %vm278 = vweird.f32 %v272
      %vm279 = vweird.f32 %v273
      %vm280 = vmor %vm278, %vm279
      %v281 = vsel %vm280, %v273, %v277
      %v282 = vand.u32 2147483647, %v272
      %vm283 = vcmp.eq.f32.partialorder %v282, 8.507059e+37
      %v284 = vand.u32 %v272, 2147483648
      %v285 = vor.u32 1.1754944e-38, %v284
      %v286 = vsel %vm283, %v285, %v281
      %v287 = vmul.f32 1.0, %v286
      %v288 = vtanh.pop %v268
      %v289 = vmul.f32 %v287, %v228
      %291 = vrot.lane.b32.xlu0 %v288, 64
      %v292 = vpop.permute.xlu0 %291
      %v294 = vmul.f32 %v287, %v292
      %296 = vrot.lane.b32.xlu0 %v294, 32
      %v297 = vpop.permute.xlu0 %296
      %v299 = vadd.f32 %v289, %v297
      %v300 = vtanh.pop %v299
      %302 = vrot.lane.b32.xlu0 %v300, 64
      %v303 = vpop.permute.xlu0 %302
      %v305 = vmul.f32 %v287, %v303
      %307 = vrot.lane.b32.xlu0 %v305, 32
      %v308 = vpop.permute.xlu0 %307
      %s310 = scalar_lea.vmem %s163, %s243
      %311 = vst.msk [vmem:[%s310] sm:$0xf] %vm240, %v308
      %s312 = scalar_select %p168, 2, 5
      %s313 = smul.u32 %s312, 4
      %s314 = scalar_lea.vmem %s153, %s313
      %v315 = vld [vmem:[%s314] sm:$0xf]
      %v316 = vsel %vm173, %v308, 0
      %318 = vmatpush.msra.mxu0 0.0
      %319 = vmatpush.msra.mxu0 0.0
      %320 = vmatpush.msra.mxu0 0.0
      %321 = vmatpush.msra.mxu0 0.0
      %322 = vmatpush.msra.mxu0 0.0
      %323 = vmatpush.msra.mxu0 0.0
      %324 = vmatpush.msra.mxu0 0.0
      %325 = vmatpush.msra.mxu0 0.0
      %326 = vmatpush.msra.mxu0 0.0
      %327 = vmatpush.msra.mxu0 0.0
      %328 = vmatpush.msra.mxu0 0.0
      %329 = vmatpush.msra.mxu0 0.0
      %330 = vmatpush.msra.mxu0 %v167
      %331 = vmatpush.msra.mxu0 %v166
      %332 = vmatpush.msra.mxu0 %v165
      %333 = vmatpush.msra.mxu0 %v164
      %334 = vmatmul.f32.gmra.mxu0 %v316
      %v335 = vpop.f32.mrf.mxu0
      %v336 = vadd.f32 0.0, %v335
      %337 = vdwg.mxu0
      %v338 = vadd.f32 %v315, %v336
      %v339 = vxor.u32 %v338, 2147483648
      %v340 = vmul.f32 %v339, 1.442695
      %v341 = vpow.pop %v340
      %v342 = vadd.f32 %v341, 1.0
      %v343 = vrcp.pop %v342
      %v344 = vmul.f32 %v342, %v343
      %v345 = vsub.f32 1.0, %v344
      %v346 = vmul.f32 %v343, %v345
      %v347 = vadd.f32 %v343, %v346
      %vm348 = vweird.f32 %v342
      %vm349 = vweird.f32 %v343
      %vm350 = vmor %vm348, %vm349
      %v351 = vsel %vm350, %v343, %v347
      %v352 = vand.u32 2147483647, %v342
      %vm353 = vcmp.eq.f32.partialorder %v352, 8.507059e+37
      %v354 = vand.u32 %v342, 2147483648
      %v355 = vor.u32 1.1754944e-38, %v354
      %v356 = vsel %vm353, %v355, %v351
      %v357 = vmul.f32 1.0, %v356
      %v358 = vtanh.pop %v338
      %v359 = vmul.f32 %v357, %v299
      %361 = vrot.lane.b32.xlu0 %v358, 64
      %v362 = vpop.permute.xlu0 %361
      %v364 = vmul.f32 %v357, %v362
      %366 = vrot.lane.b32.xlu0 %v364, 32
      %v367 = vpop.permute.xlu0 %366
      %v369 = vadd.f32 %v359, %v367
      %v370 = vtanh.pop %v369
      %372 = vrot.lane.b32.xlu0 %v370, 64
      %v373 = vpop.permute.xlu0 %372
      %v375 = vmul.f32 %v357, %v373
      %377 = vrot.lane.b32.xlu0 %v375, 32
      %v378 = vpop.permute.xlu0 %377
      %s380 = scalar_lea.vmem %s163, %s313
      %381 = vst.msk [vmem:[%s380] sm:$0xf] %vm240, %v378
      %s382 = scalar_select %p168, 3, 4
      %s383 = smul.u32 %s382, 4
      %s384 = scalar_lea.vmem %s153, %s383
      %v385 = vld [vmem:[%s384] sm:$0xf]
      %v386 = vsel %vm173, %v378, 0
      %388 = vmatpush.msra.mxu0 0.0
      %389 = vmatpush.msra.mxu0 0.0
      %390 = vmatpush.msra.mxu0 0.0
      %391 = vmatpush.msra.mxu0 0.0
      %392 = vmatpush.msra.mxu0 0.0
      %393 = vmatpush.msra.mxu0 0.0
      %394 = vmatpush.msra.mxu0 0.0
      %395 = vmatpush.msra.mxu0 0.0
      %396 = vmatpush.msra.mxu0 0.0
      %397 = vmatpush.msra.mxu0 0.0
      %398 = vmatpush.msra.mxu0 0.0
      %399 = vmatpush.msra.mxu0 0.0
      %400 = vmatpush.msra.mxu0 %v167
      %401 = vmatpush.msra.mxu0 %v166
      %402 = vmatpush.msra.mxu0 %v165
      %403 = vmatpush.msra.mxu0 %v164
      %404 = vmatmul.f32.gmra.mxu0 %v386
      %v405 = vpop.f32.mrf.mxu0
      %v406 = vadd.f32 0.0, %v405
      %407 = vdwg.mxu0
      %v408 = vadd.f32 %v385, %v406
      %v409 = vxor.u32 %v408, 2147483648
      %v410 = vmul.f32 %v409, 1.442695
      %v411 = vpow.pop %v410
      %v412 = vadd.f32 %v411, 1.0
      %v413 = vrcp.pop %v412
      %v414 = vmul.f32 %v412, %v413
      %v415 = vsub.f32 1.0, %v414
      %v416 = vmul.f32 %v413, %v415
      %v417 = vadd.f32 %v413, %v416
      %vm418 = vweird.f32 %v412
      %vm419 = vweird.f32 %v413
      %vm420 = vmor %vm418, %vm419
      %v421 = vsel %vm420, %v413, %v417
      %v422 = vand.u32 2147483647, %v412
      %vm423 = vcmp.eq.f32.partialorder %v422, 8.507059e+37
      %v424 = vand.u32 %v412, 2147483648
      %v425 = vor.u32 1.1754944e-38, %v424
      %v426 = vsel %vm423, %v425, %v421
      %v427 = vmul.f32 1.0, %v426
      %v428 = vtanh.pop %v408
      %v429 = vmul.f32 %v427, %v369
      %431 = vrot.lane.b32.xlu0 %v428, 64
      %v432 = vpop.permute.xlu0 %431
      %v434 = vmul.f32 %v427, %v432
      %436 = vrot.lane.b32.xlu0 %v434, 32
      %v437 = vpop.permute.xlu0 %436
      %v439 = vadd.f32 %v429, %v437
      %v440 = vtanh.pop %v439
      %442 = vrot.lane.b32.xlu0 %v440, 64
      %v443 = vpop.permute.xlu0 %442
      %v445 = vmul.f32 %v427, %v443
      %447 = vrot.lane.b32.xlu0 %v445, 32
      %v448 = vpop.permute.xlu0 %447
      %s450 = scalar_lea.vmem %s163, %s383
      %451 = vst.msk [vmem:[%s450] sm:$0xf] %vm240, %v448
      %s452 = scalar_select %p168, 4, 3
      %s453 = smul.u32 %s452, 4
      %s454 = scalar_lea.vmem %s153, %s453
      %v455 = vld [vmem:[%s454] sm:$0xf]
      %v456 = vsel %vm173, %v448, 0
      %458 = vmatpush.msra.mxu0 0.0
      %459 = vmatpush.msra.mxu0 0.0
      %460 = vmatpush.msra.mxu0 0.0
      %461 = vmatpush.msra.mxu0 0.0
      %462 = vmatpush.msra.mxu0 0.0
      %463 = vmatpush.msra.mxu0 0.0
      %464 = vmatpush.msra.mxu0 0.0
      %465 = vmatpush.msra.mxu0 0.0
      %466 = vmatpush.msra.mxu0 0.0
      %467 = vmatpush.msra.mxu0 0.0
      %468 = vmatpush.msra.mxu0 0.0
      %469 = vmatpush.msra.mxu0 0.0
      %470 = vmatpush.msra.mxu0 %v167
      %471 = vmatpush.msra.mxu0 %v166
      %472 = vmatpush.msra.mxu0 %v165
      %473 = vmatpush.msra.mxu0 %v164
      %474 = vmatmul.f32.gmra.mxu0 %v456
      %v475 = vpop.f32.mrf.mxu0
      %v476 = vadd.f32 0.0, %v475
      %477 = vdwg.mxu0
      %v478 = vadd.f32 %v455, %v476
      %v479 = vxor.u32 %v478, 2147483648
      %v480 = vmul.f32 %v479, 1.442695
      %v481 = vpow.pop %v480
      %v482 = vadd.f32 %v481, 1.0
      %v483 = vrcp.pop %v482
      %v484 = vmul.f32 %v482, %v483
      %v485 = vsub.f32 1.0, %v484
      %v486 = vmul.f32 %v483, %v485
      %v487 = vadd.f32 %v483, %v486
      %vm488 = vweird.f32 %v482
      %vm489 = vweird.f32 %v483
      %vm490 = vmor %vm488, %vm489
      %v491 = vsel %vm490, %v483, %v487
      %v492 = vand.u32 2147483647, %v482
      %vm493 = vcmp.eq.f32.partialorder %v492, 8.507059e+37
      %v494 = vand.u32 %v482, 2147483648
      %v495 = vor.u32 1.1754944e-38, %v494
      %v496 = vsel %vm493, %v495, %v491
      %v497 = vmul.f32 1.0, %v496
      %v498 = vtanh.pop %v478
      %v499 = vmul.f32 %v497, %v439
      %501 = vrot.lane.b32.xlu0 %v498, 64
      %v502 = vpop.permute.xlu0 %501
      %v504 = vmul.f32 %v497, %v502
      %506 = vrot.lane.b32.xlu0 %v504, 32
      %v507 = vpop.permute.xlu0 %506
      %v509 = vadd.f32 %v499, %v507
      %v510 = vtanh.pop %v509
      %512 = vrot.lane.b32.xlu0 %v510, 64
      %v513 = vpop.permute.xlu0 %512
      %v515 = vmul.f32 %v497, %v513
      %517 = vrot.lane.b32.xlu0 %v515, 32
      %v518 = vpop.permute.xlu0 %517
      %s520 = scalar_lea.vmem %s163, %s453
      %521 = vst.msk [vmem:[%s520] sm:$0xf] %vm240, %v518
      %s522 = scalar_select %p168, 5, 2
      %s523 = smul.u32 %s522, 4
      %s524 = scalar_lea.vmem %s153, %s523
      %v525 = vld [vmem:[%s524] sm:$0xf]
      %v526 = vsel %vm173, %v518, 0
      %528 = vmatpush.msra.mxu0 0.0
      %529 = vmatpush.msra.mxu0 0.0
      %530 = vmatpush.msra.mxu0 0.0
      %531 = vmatpush.msra.mxu0 0.0
      %532 = vmatpush.msra.mxu0 0.0
      %533 = vmatpush.msra.mxu0 0.0
      %534 = vmatpush.msra.mxu0 0.0
      %535 = vmatpush.msra.mxu0 0.0
      %536 = vmatpush.msra.mxu0 0.0
      %537 = vmatpush.msra.mxu0 0.0
      %538 = vmatpush.msra.mxu0 0.0
      %539 = vmatpush.msra.mxu0 0.0
      %540 = vmatpush.msra.mxu0 %v167
      %541 = vmatpush.msra.mxu0 %v166
      %542 = vmatpush.msra.mxu0 %v165
      %543 = vmatpush.msra.mxu0 %v164
      %544 = vmatmul.f32.gmra.mxu0 %v526
      %v545 = vpop.f32.mrf.mxu0
      %v546 = vadd.f32 0.0, %v545
      %547 = vdwg.mxu0
      %v548 = vadd.f32 %v525, %v546
      %v549 = vxor.u32 %v548, 2147483648
      %v550 = vmul.f32 %v549, 1.442695
      %v551 = vpow.pop %v550
      %v552 = vadd.f32 %v551, 1.0
      %v553 = vrcp.pop %v552
      %v554 = vmul.f32 %v552, %v553
      %v555 = vsub.f32 1.0, %v554
      %v556 = vmul.f32 %v553, %v555
      %v557 = vadd.f32 %v553, %v556
      %vm558 = vweird.f32 %v552
      %vm559 = vweird.f32 %v553
      %vm560 = vmor %vm558, %vm559
      %v561 = vsel %vm560, %v553, %v557
      %v562 = vand.u32 2147483647, %v552
      %vm563 = vcmp.eq.f32.partialorder %v562, 8.507059e+37
      %v564 = vand.u32 %v552, 2147483648
      %v565 = vor.u32 1.1754944e-38, %v564
      %v566 = vsel %vm563, %v565, %v561
      %v567 = vmul.f32 1.0, %v566
      %v568 = vtanh.pop %v548
      %v569 = vmul.f32 %v567, %v509
      %571 = vrot.lane.b32.xlu0 %v568, 64
      %v572 = vpop.permute.xlu0 %571
      %v574 = vmul.f32 %v567, %v572
      %576 = vrot.lane.b32.xlu0 %v574, 32
      %v577 = vpop.permute.xlu0 %576
      %v579 = vadd.f32 %v569, %v577
      %v580 = vtanh.pop %v579
      %582 = vrot.lane.b32.xlu0 %v580, 64
      %v583 = vpop.permute.xlu0 %582
      %v585 = vmul.f32 %v567, %v583
      %587 = vrot.lane.b32.xlu0 %v585, 32
      %v588 = vpop.permute.xlu0 %587
      %s590 = scalar_lea.vmem %s163, %s523
      %591 = vst.msk [vmem:[%s590] sm:$0xf] %vm240, %v588
      %s592 = scalar_select %p168, 6, 1
      %s593 = smul.u32 %s592, 4
      %s594 = scalar_lea.vmem %s153, %s593
      %v595 = vld [vmem:[%s594] sm:$0xf]
      %v596 = vsel %vm173, %v588, 0
      %598 = vmatpush.msra.mxu0 0.0
      %599 = vmatpush.msra.mxu0 0.0
      %600 = vmatpush.msra.mxu0 0.0
      %601 = vmatpush.msra.mxu0 0.0
      %602 = vmatpush.msra.mxu0 0.0
      %603 = vmatpush.msra.mxu0 0.0
      %604 = vmatpush.msra.mxu0 0.0
      %605 = vmatpush.msra.mxu0 0.0
      %606 = vmatpush.msra.mxu0 0.0
      %607 = vmatpush.msra.mxu0 0.0
      %608 = vmatpush.msra.mxu0 0.0
      %609 = vmatpush.msra.mxu0 0.0
      %610 = vmatpush.msra.mxu0 %v167
      %611 = vmatpush.msra.mxu0 %v166
      %612 = vmatpush.msra.mxu0 %v165
      %613 = vmatpush.msra.mxu0 %v164
      %614 = vmatmul.f32.gmra.mxu0 %v596
      %v615 = vpop.f32.mrf.mxu0
      %v616 = vadd.f32 0.0, %v615
      %617 = vdwg.mxu0
      %v618 = vadd.f32 %v595, %v616
      %v619 = vxor.u32 %v618, 2147483648
      %v620 = vmul.f32 %v619, 1.442695
      %v621 = vpow.pop %v620
      %v622 = vadd.f32 %v621, 1.0
      %v623 = vrcp.pop %v622
      %v624 = vmul.f32 %v622, %v623
      %v625 = vsub.f32 1.0, %v624
      %v626 = vmul.f32 %v623, %v625
      %v627 = vadd.f32 %v623, %v626
      %vm628 = vweird.f32 %v622
      %vm629 = vweird.f32 %v623
      %vm630 = vmor %vm628, %vm629
      %v631 = vsel %vm630, %v623, %v627
      %v632 = vand.u32 2147483647, %v622
      %vm633 = vcmp.eq.f32.partialorder %v632, 8.507059e+37
      %v634 = vand.u32 %v622, 2147483648
      %v635 = vor.u32 1.1754944e-38, %v634
      %v636 = vsel %vm633, %v635, %v631
      %v637 = vmul.f32 1.0, %v636
      %v638 = vtanh.pop %v618
      %v639 = vmul.f32 %v637, %v579
      %641 = vrot.lane.b32.xlu0 %v638, 64
      %v642 = vpop.permute.xlu0 %641
      %v644 = vmul.f32 %v637, %v642
      %646 = vrot.lane.b32.xlu0 %v644, 32
      %v647 = vpop.permute.xlu0 %646
      %v649 = vadd.f32 %v639, %v647
      %v650 = vtanh.pop %v649
      %652 = vrot.lane.b32.xlu0 %v650, 64
      %v653 = vpop.permute.xlu0 %652
      %v655 = vmul.f32 %v637, %v653
      %657 = vrot.lane.b32.xlu0 %v655, 32
      %v658 = vpop.permute.xlu0 %657
      %s660 = scalar_lea.vmem %s163, %s593
      %661 = vst.msk [vmem:[%s660] sm:$0xf] %vm240, %v658
      %s662 = scalar_select %p168, 7, 0
      %s663 = smul.u32 %s662, 4
      %s664 = scalar_lea.vmem %s153, %s663
      %v665 = vld [vmem:[%s664] sm:$0xf]
      %v666 = vsel %vm173, %v658, 0
      %668 = vmatpush.msra.mxu0 0.0
      %669 = vmatpush.msra.mxu0 0.0
      %670 = vmatpush.msra.mxu0 0.0
      %671 = vmatpush.msra.mxu0 0.0
      %672 = vmatpush.msra.mxu0 0.0
      %673 = vmatpush.msra.mxu0 0.0
      %674 = vmatpush.msra.mxu0 0.0
      %675 = vmatpush.msra.mxu0 0.0
      %676 = vmatpush.msra.mxu0 0.0
      %677 = vmatpush.msra.mxu0 0.0
      %678 = vmatpush.msra.mxu0 0.0
      %679 = vmatpush.msra.mxu0 0.0
      %680 = vmatpush.msra.mxu0 %v167
      %681 = vmatpush.msra.mxu0 %v166
      %682 = vmatpush.msra.mxu0 %v165
      %683 = vmatpush.msra.mxu0 %v164
      %684 = vmatmul.f32.gmra.mxu0 %v666
      %v685 = vpop.f32.mrf.mxu0
      %v686 = vadd.f32 0.0, %v685
      %687 = vdwg.mxu0
      %v688 = vadd.f32 %v665, %v686
      %v689 = vxor.u32 %v688, 2147483648
      %v690 = vmul.f32 %v689, 1.442695
      %v691 = vpow.pop %v690
      %v692 = vadd.f32 %v691, 1.0
      %v693 = vrcp.pop %v692
      %v694 = vmul.f32 %v692, %v693
      %v695 = vsub.f32 1.0, %v694
      %v696 = vmul.f32 %v693, %v695
      %v697 = vadd.f32 %v693, %v696
      %vm698 = vweird.f32 %v692
      %vm699 = vweird.f32 %v693
      %vm700 = vmor %vm698, %vm699
      %v701 = vsel %vm700, %v693, %v697
      %v702 = vand.u32 2147483647, %v692
      %vm703 = vcmp.eq.f32.partialorder %v702, 8.507059e+37
      %v704 = vand.u32 %v692, 2147483648
      %v705 = vor.u32 1.1754944e-38, %v704
      %v706 = vsel %vm703, %v705, %v701
      %v707 = vmul.f32 1.0, %v706
      %v708 = vtanh.pop %v688
      %v709 = vmul.f32 %v707, %v649
      %711 = vrot.lane.b32.xlu0 %v708, 64
      %v712 = vpop.permute.xlu0 %711
      %v714 = vmul.f32 %v707, %v712
      %716 = vrot.lane.b32.xlu0 %v714, 32
      %v717 = vpop.permute.xlu0 %716
      %v719 = vadd.f32 %v709, %v717
      %v720 = vtanh.pop %v719
      %722 = vrot.lane.b32.xlu0 %v720, 64
      %v723 = vpop.permute.xlu0 %722
      %v725 = vmul.f32 %v707, %v723
      %727 = vrot.lane.b32.xlu0 %v725, 32
      %v728 = vpop.permute.xlu0 %727
      %s730 = scalar_lea.vmem %s163, %s663
      %731 = vst.msk [vmem:[%s730] sm:$0xf] %vm240, %v728
      %p732 = scmp.lt.s32.totalorder %s13, 1
      %s733 = scalar_select %p732, %s13, 1
      %s734 = smul.addr %s733, 8
      %s735 = smul.addr %s734, 4
      %s736 = scalar_lea.vmem %s2, %s735
      // Predicated region
      $region29: #{encoder_forward.2} parent=27 // pred_check
        %p737 = pneg %p83
      $region30: #{encoder_forward.2} parent=27 // pred_check_branch
        %739 = sbr.rel (%p737) target = $region32
      $region31: #{encoder_forward.2} parent=27 // pred_region
        _
      $region32: #{encoder_forward.2} parent=27 // pred_fallthru
        _
    $region28: #{encoder_forward.2} parent=5 // pred_fallthru
      _
    %p740 = scmp.le.s32.totalorder 2, %s8
    // Predicated region
    $region33: #{encoder_forward.2} parent=5 // pred_check
      %p741 = pneg %p740
    $region34: #{encoder_forward.2} parent=5 // pred_check_branch
      %743 = sbr.rel (%p741) target = $region36
    $region35: #{encoder_forward.2} parent=5 // pred_region
      %s744 = ssub.s32 %s8, 2
      // Predicated region
      $region37: #{encoder_forward.2} parent=35 // pred_check
        %p745 = pneg %p89
      $region38: #{encoder_forward.2} parent=35 // pred_check_branch
        %747 = sbr.rel (%p745) target = $region40
      $region39: #{encoder_forward.2} parent=35 // pred_region
        %p748 = scmp.lt.s32.totalorder %s14, 1
        %s749 = scalar_select %p748, %s14, 1
        %s750 = smul.addr %s749, 8
        %s751 = smul.addr %s750, 4
        %s752 = scalar_lea.vmem %s2, %s751
      $region40: #{encoder_forward.2} parent=35 // pred_fallthru
        _
    $region36: #{encoder_forward.2} parent=5 // pred_fallthru
      _
  $region6: #{encoder_forward.2} parent=0 // loop_footer
    %s12 = sadd.s32 1, %s8
  $region7: #{encoder_forward.2} parent=0 // loop_footer_branch
    %7 = sbr.rel target = $region3
  $region8: #{encoder_forward.2} parent=0 // loop_exit
    _

</llo_original>
